<compile_context>
chip_gen: v5e
topology: v5e:2x2
jax: 0.10.0
libtpu: 0.0.40
codegen_flags: <defaults>
</compile_context>

<pallas_src>
import functools

import jax
import jax.numpy as jnp
from jax.experimental import pallas as pl
from jax.experimental.pallas import tpu as pltpu


# ---------------------------------------------------------------------------
# Soft-label construction (pure-JAX reference / fallback path)
# ---------------------------------------------------------------------------
def create_soft_label(target, num_classes, smooth_type, eps=0.1, sigma=1.0):
    target = target.astype(jnp.int32)
    one_hot = jax.nn.one_hot(target, num_classes, dtype=jnp.float32)
    if smooth_type == "one_hot":
        return one_hot
    if smooth_type == "uniform":
        return one_hot * (1.0 - eps) + eps / num_classes
    if smooth_type == "gaussian":
        idx = jnp.arange(num_classes, dtype=jnp.float32)[None, :]
        center = target.astype(jnp.float32)[:, None]
        g = jnp.exp(-0.5 * ((idx - center) / sigma) ** 2)
        return g / jnp.sum(g, axis=-1, keepdims=True)
    raise ValueError(f"unknown smooth_type: {smooth_type}")


def _soft_ce_reference(logits, soft):
    logp = jax.nn.log_softmax(logits.astype(jnp.float32), axis=-1)
    return jnp.mean(-jnp.sum(soft * logp, axis=-1))


def _gaussian_smoothing_matrix(num_classes, sigma):
    # Row t is the normalized gaussian soft label for class t (same arithmetic
    # as create_soft_label's gaussian branch).
    idx = jnp.arange(num_classes, dtype=jnp.float32)
    d = (idx[None, :] - idx[:, None]) * (1.0 / sigma)
    g = jnp.exp(-0.5 * d * d)
    return g / jnp.sum(g, axis=-1, keepdims=True)          # (C, C) f32


# ---------------------------------------------------------------------------
# Pallas kernel: batch-tiled soft-target cross-entropy, per-core accumulators
# ---------------------------------------------------------------------------
def _soft_ce_kernel(x_ref, t_ref, *rest, batch, tile_b, num_classes,
                    tiles_per_core, smooth_type, eps, sigma):
    if smooth_type == "gaussian":
        w_ref, o_ref = rest
    else:
        (o_ref,) = rest
        w_ref = None

    c = pl.program_id(0)          # core (parallel) axis
    i = pl.program_id(1)          # batch-tile (arbitrary) axis

    # Zero this core's resident accumulator block at the start of its sweep.
    @pl.when(i == 0)
    def _():
        o_ref[...] = jnp.zeros_like(o_ref)

    x = x_ref[...].astype(jnp.float32)        # (tile_b, C) logits, upcast in VMEM
    tgt = t_ref[...]                          # (tile_b, 1)  int32 class indices

    # ---- build the soft label in-kernel (no second (B,C) HBM stream) ----
    cls_i = jax.lax.broadcasted_iota(jnp.int32, (tile_b, num_classes), 1)
    one_hot = (cls_i == tgt).astype(jnp.float32)
    if smooth_type == "one_hot":
        soft = one_hot
    elif smooth_type == "uniform":
        soft = one_hot * (1.0 - eps) + (eps / num_classes)
    elif smooth_type == "gaussian":
        # Row-select of the precomputed smoothing matrix via the idle MXU:
        # removes per-element EUP exp + divide (the EUP would otherwise become
        # the binding unit with bf16 logits on v7x).
        soft = jnp.dot(one_hot, w_ref[...],
                       preferred_element_type=jnp.float32,
                       precision=jax.lax.Precision.HIGHEST)
    else:
        raise ValueError(f"unknown smooth_type: {smooth_type}")

    # ---- numerically stable log-sum-exp over the class (lane) axis ----
    m = jnp.max(x, axis=-1, keepdims=True)
    lse = jnp.log(jnp.sum(jnp.exp(x - m), axis=-1, keepdims=True)) + m

    # General F.cross_entropy form for probability targets: sum(t)*lse - <t,x>.
    t_sum = jnp.sum(soft, axis=-1, keepdims=True)
    dot = jnp.sum(soft * x, axis=-1, keepdims=True)
    per_row = t_sum * lse - dot                                     # (tile_b, 1)

    # Mask rows beyond the true batch (ragged / fully-OOB tiles may contain
    # stale or clamped data).  Must stay a select (NaN/Inf-safe), not a multiply.
    row = (c * tiles_per_core + i) * tile_b + jax.lax.broadcasted_iota(
        jnp.int32, (tile_b, 1), 0)
    per_row = jnp.where(row < batch, per_row, 0.0)

    # Accumulate the tile's scalar sum, broadcast over this core's (1,8,128)
    # accumulator block (element [0,0,0] is read back in the wrapper).
    o_ref[...] += jnp.sum(per_row)


def _round_up(x, m):
    return ((x + m - 1) // m) * m


def _pick_tile_b(batch, num_classes, itemsize, budget_bytes):
    # bf16 vregs pack (16,128): prefer multiples of 16 for 2-byte dtypes.
    align = 16 if itemsize == 2 else 8
    # Lane-padded VMEM footprint per batch row:
    #   logits row pads to round_up(C,128) lanes; the (.,1) i32 target column
    #   also pads to 128 lanes (512 B/row) even though its HBM traffic is 4 B.
    row_bytes = _round_up(num_classes, 128) * itemsize + 128 * 4
    tb = budget_bytes // max(1, row_bytes)
    tb = max(align, (tb // align) * align)
    # No fixed row cap (perf review) — only cap at the (rounded-up) batch.
    tb = min(tb, _round_up(batch, align))
    return max(align, (tb // align) * align)


def soft_ce_loss_pallas(logits, target, *, smooth_type, eps=0.1, sigma=1.0,
                        tile_b=None, vmem_budget_bytes=8 * 1024 * 1024):
    assert logits.ndim == 2, "expected (B, C) logits"
    B, C = logits.shape
    itemsize = jnp.dtype(logits.dtype).itemsize
    align = 16 if itemsize == 2 else 8
    if tile_b is None:
        tile_b = _pick_tile_b(B, C, itemsize, vmem_budget_bytes)
    else:
        tile_b = max(align, _round_up(int(tile_b), align))

    tiles_total = pl.cdiv(B, tile_b)
    # Split the batch tiles across both TensorCores on v7x ("parallel" axis);
    # on 1-TC chips this is just a cheap 2-iteration outer loop.
    num_cores = 2 if tiles_total >= 2 else 1
    tiles_per_core = pl.cdiv(tiles_total, num_cores)
    last_block = tiles_total - 1

    tgt2d = target.astype(jnp.int32).reshape(B, 1)

    def batch_block(cc, ii):
        # Clamp to the last valid block so no DMA is fully out of bounds; the
        # in-kernel row mask (which uses the *unclamped* index) zeroes any
        # contribution from clamped / padded rows.
        return (jnp.minimum(cc * tiles_per_core + ii, last_block), 0)

    in_specs = [
        pl.BlockSpec((tile_b, C), batch_block),   # logits tile
        pl.BlockSpec((tile_b, 1), batch_block),   # int targets tile
    ]
    args = [logits, tgt2d]
    if smooth_type == "gaussian":
        w = _gaussian_smoothing_matrix(C, sigma)
        in_specs.append(pl.BlockSpec((C, C), lambda cc, ii: (0, 0)))  # resident
        args.append(w)

    kernel = functools.partial(
        _soft_ce_kernel,
        batch=B, tile_b=tile_b, num_classes=C, tiles_per_core=tiles_per_core,
        smooth_type=smooth_type, eps=eps, sigma=sigma)

    # Explicit scoped-VMEM limit: double-buffered padded tiles + extras + slack
    # (makes the tile policy deterministic across v5e/v6e/v7x defaults).
    padded_c = _round_up(C, 128)
    logit_tile_bytes = tile_b * padded_c * itemsize
    tgt_tile_bytes = tile_b * 128 * 4
    w_bytes = padded_c * padded_c * 4 if smooth_type == "gaussian" else 0
    vmem_limit = int(2 * (logit_tile_bytes + tgt_tile_bytes) + 2 * w_bytes
                     + (4 << 20))

    cost = pl.CostEstimate(
        flops=8 * B * C + (2 * B * C * C if smooth_type == "gaussian" else 0),
        transcendentals=B * C,
        bytes_accessed=B * C * itemsize + B * 4 + w_bytes + num_cores * 8 * 128 * 4)

    out = pl.pallas_call(
        kernel,
        out_shape=jax.ShapeDtypeStruct((num_cores, 8, 128), jnp.float32),
        grid_spec=pltpu.PrefetchScalarGridSpec(
            num_scalar_prefetch=0,
            grid=(num_cores, tiles_per_core),
            in_specs=in_specs,
            # One resident (8,128)-shaped accumulator block per core.
            out_specs=pl.BlockSpec((1, 8, 128), lambda cc, ii: (cc, 0, 0)),
        ),
        compiler_params=pltpu.CompilerParams(
            dimension_semantics=("parallel", "arbitrary"),
            vmem_limit_bytes=vmem_limit),
        cost_estimate=cost,
    )(*args)

    # Finalize in the wrapper: sum the per-core partials, fold in 1/B.
    return jnp.sum(out[:, 0, 0]) * (1.0 / B)


# ---------------------------------------------------------------------------
# Module wrapper (SoftCELoss.forward)
# ---------------------------------------------------------------------------
class SoftCELoss:
    def __init__(self, smooth_type, eps=0.1, sigma=1.0, min_pallas_elems=1 << 15):
        self.smooth_type = smooth_type
        self.eps = eps
        self.sigma = sigma
        # For tiny problems the fixed pallas_call overhead dominates; fall back
        # to plain XLA below this element count (set 0 to force the kernel).
        self.min_pallas_elems = min_pallas_elems

    def __call__(self, input, target):
        B, C = input.shape
        if B * C < self.min_pallas_elems:
            soft = create_soft_label(target, C, self.smooth_type, self.eps, self.sigma)
            return _soft_ce_reference(input, soft)
        return soft_ce_loss_pallas(input, target, smooth_type=self.smooth_type,
                                   eps=self.eps, sigma=self.sigma)


# ---------------------------------------------------------------------------
if __name__ == "__main__":
    key = jax.random.PRNGKey(0)
    k1, k2, k3, k4 = jax.random.split(key, 4)

    # Small demo shape matching the module (B samples, C classes).
    B, C = 8, 32
    logits = jax.random.normal(k1, (B, C), dtype=jnp.float32)
    target = jax.random.randint(k2, (B,), 0, C)

    # Force the Pallas path at this tiny demo shape (production default keeps
    # min_pallas_elems=1<<15 and would use the XLA fallback here).
    loss_fn = SoftCELoss(smooth_type="gaussian", min_pallas_elems=0)
    loss = loss_fn(logits, target)
    jax.block_until_ready(loss)

    ref = _soft_ce_reference(logits, create_soft_label(target, C, "gaussian"))
    assert jnp.allclose(loss, ref, atol=1e-4, rtol=1e-4), (loss, ref)

    # Multi-tile path: exercises the 2-core grid split, ragged last tile and a
    # fully-out-of-bounds (clamped+masked) tile, for all smoothing variants.
    B2, C2 = 300, 32
    logits2 = jax.random.normal(k3, (B2, C2), dtype=jnp.float32)
    target2 = jax.random.randint(k4, (B2,), 0, C2)
    for st in ("one_hot", "uniform", "gaussian"):
        got = soft_ce_loss_pallas(logits2, target2, smooth_type=st, tile_b=64)
        jax.block_until_ready(got)
        ref2 = _soft_ce_reference(logits2, create_soft_label(target2, C2, st))
        assert jnp.allclose(got, ref2, atol=1e-4, rtol=1e-4), (st, got, ref2)

    # bf16 logits path (halved HBM traffic; 16-row alignment); both the kernel
    # and the reference consume the identical bf16 values, upcast to f32.
    logits_bf = logits2.astype(jnp.bfloat16)
    got_bf = soft_ce_loss_pallas(logits_bf, target2, smooth_type="uniform", tile_b=48)
    jax.block_until_ready(got_bf)
    ref_bf = _soft_ce_reference(logits_bf, create_soft_label(target2, C2, "uniform"))
    assert jnp.allclose(got_bf, ref_bf, atol=1e-4, rtol=1e-4), (got_bf, ref_bf)

    print("KERNEL_OK")
</pallas_src>

<mosaic_0001>
module attributes {stable_mosaic.version = 11 : i64} {
  func.func @_soft_ce_kernel(%arg0: i32, %arg1: i32, %arg2: memref<8x32xf32, #tpu.memory_space<vmem>>, %arg3: memref<8x1xi32, #tpu.memory_space<vmem>>, %arg4: memref<32x32xf32, #tpu.memory_space<vmem>>, %arg5: memref<1x8x128xf32, #tpu.memory_space<vmem>>) attributes {dimension_semantics = [#tpu.dimension_semantics<parallel>, #tpu.dimension_semantics<arbitrary>], iteration_bounds = array<i64: 1, 1>, scalar_prefetch = 0 : i64, scratch_operands = 0 : i64, tpu.core_type = #tpu.core_type<tc>, window_params = [{transform_indices = @transform_0, window_bounds = array<i64: 8, 32>}, {transform_indices = @transform_1, window_bounds = array<i64: 8, 1>}, {pipeline_mode = #tpu.pipeline_mode<synchronous>, transform_indices = @transform_2, window_bounds = array<i64: 32, 32>}, {transform_indices = @transform_3, window_bounds = array<i64: 1, 8, 128>}]} {
    %c0_i32 = arith.constant 0 : i32
    %0 = arith.cmpi eq, %arg1, %c0_i32 : i32
    %1 = arith.extui %0 : i1 to i32
    %c0_i32_0 = arith.constant 0 : i32
    %2 = arith.cmpi ne, %1, %c0_i32_0 : i32
    scf.if %2 {
      %cst_19 = arith.constant 0.000000e+00 : f32
      %46 = vector.broadcast %cst_19 : f32 to vector<1x8x128xf32>
      %c0_20 = arith.constant 0 : index
      %c0_21 = arith.constant 0 : index
      %c0_22 = arith.constant 0 : index
      %47 = vector.load %arg5[%c0_20, %c0_21, %c0_22] : memref<1x8x128xf32, #tpu.memory_space<vmem>>, vector<1x8x128xf32>
      tpu.vector_store %arg5[%c0_20, %c0_21, %c0_22], %46 {strides = array<i32>} : memref<1x8x128xf32, #tpu.memory_space<vmem>>, vector<1x8x128xf32>,
    } else {
    }
    %c0 = arith.constant 0 : index
    %c0_1 = arith.constant 0 : index
    %3 = vector.load %arg2[%c0, %c0_1] : memref<8x32xf32, #tpu.memory_space<vmem>>, vector<8x32xf32>
    %c0_2 = arith.constant 0 : index
    %c0_3 = arith.constant 0 : index
    %4 = vector.load %arg3[%c0_2, %c0_3] : memref<8x1xi32, #tpu.memory_space<vmem>>, vector<8x1xi32>
    %5 = tpu.iota {dimensions = array<i32: 1>} : vector<8x32xi32>
    %6 = vector.broadcast %4 : vector<8x1xi32> to vector<8x32xi32>
    %7 = arith.cmpi eq, %5, %6 : vector<8x32xi32>
    %8 = arith.extui %7 : vector<8x32xi1> to vector<8x32xi32>
    %9 = arith.sitofp %8 : vector<8x32xi32> to vector<8x32xf32>
    %c0_4 = arith.constant 0 : index
    %c0_5 = arith.constant 0 : index
    %10 = vector.load %arg4[%c0_4, %c0_5] : memref<32x32xf32, #tpu.memory_space<vmem>>, vector<32x32xf32>
    %cst = arith.constant dense<0.000000e+00> : vector<8x32xf32>
    %11 = tpu.matmul %9, %10, %cst {dimension_numbers = #tpu.dot_dimension_numbers<[1], [0], [0], [1], [0, 0, 1, 1], [], []>, precision = #tpu.contract_precision<fp32>} : vector<8x32xf32>, vector<32x32xf32>, vector<8x32xf32> -> vector<8x32xf32>
    %cst_6 = arith.constant dense<0xFF800000> : vector<8xf32>
    %12 = vector.multi_reduction <maximumf>, %3, %cst_6 [1] : vector<8x32xf32> to vector<8xf32>
    %13 = vector.shape_cast %12 : vector<8xf32> to vector<8x1xf32>
    %14 = vector.broadcast %13 : vector<8x1xf32> to vector<8x32xf32>
    %15 = arith.subf %3, %14 : vector<8x32xf32>
    %16 = math.exp %15 : vector<8x32xf32>
    %cst_7 = arith.constant dense<0.000000e+00> : vector<8xf32>
    %17 = vector.multi_reduction <add>, %16, %cst_7 [1] : vector<8x32xf32> to vector<8xf32>
    %18 = vector.shape_cast %17 : vector<8xf32> to vector<8x1xf32>
    %19 = math.log %18 : vector<8x1xf32>
    %20 = arith.addf %19, %13 : vector<8x1xf32>
    %cst_8 = arith.constant dense<0.000000e+00> : vector<8xf32>
    %21 = vector.multi_reduction <add>, %11, %cst_8 [1] : vector<8x32xf32> to vector<8xf32>
    %22 = vector.shape_cast %21 : vector<8xf32> to vector<8x1xf32>
    %23 = arith.mulf %11, %3 : vector<8x32xf32>
    %cst_9 = arith.constant dense<0.000000e+00> : vector<8xf32>
    %24 = vector.multi_reduction <add>, %23, %cst_9 [1] : vector<8x32xf32> to vector<8xf32>
    %25 = vector.shape_cast %24 : vector<8xf32> to vector<8x1xf32>
    %26 = arith.mulf %22, %20 : vector<8x1xf32>
    %27 = arith.subf %26, %25 : vector<8x1xf32>
    %c1_i32 = arith.constant 1 : i32
    %28 = arith.muli %arg0, %c1_i32 : i32
    %29 = arith.addi %28, %arg1 : i32
    %c8_i32 = arith.constant 8 : i32
    %30 = arith.muli %29, %c8_i32 : i32
    %31 = tpu.iota {dimensions = array<i32: 0>} : vector<8x1xi32>
    %32 = vector.broadcast %30 : i32 to vector<8x1xi32>
    %33 = arith.addi %32, %31 : vector<8x1xi32>
    %c8_i32_10 = arith.constant 8 : i32
    %34 = vector.broadcast %c8_i32_10 : i32 to vector<8x1xi32>
    %35 = arith.cmpi slt, %33, %34 : vector<8x1xi32>
    %cst_11 = arith.constant 0.000000e+00 : f32
    %36 = vector.broadcast %cst_11 : f32 to vector<8x1xf32>
    %37 = arith.select %35, %27, %36 : vector<8x1xi1>, vector<8x1xf32>
    %c0_12 = arith.constant 0 : index
    %c0_13 = arith.constant 0 : index
    %c0_14 = arith.constant 0 : index
    %38 = vector.load %arg5[%c0_12, %c0_13, %c0_14] : memref<1x8x128xf32, #tpu.memory_space<vmem>>, vector<1x8x128xf32>
    %39 = vector.shape_cast %37 : vector<8x1xf32> to vector<1x8x1xf32>
    %cst_15 = arith.constant dense<0.000000e+00> : vector<1xf32>
    %40 = vector.multi_reduction <add>, %39, %cst_15 [1, 2] : vector<1x8x1xf32> to vector<1xf32>
    %41 = vector.shape_cast %40 : vector<1xf32> to vector<1x1x1xf32>
    %42 = vector.extract %41[0, 0, 0] : f32 from vector<1x1x1xf32>
    %43 = vector.broadcast %42 : f32 to vector<1x8x128xf32>
    %44 = arith.addf %38, %43 : vector<1x8x128xf32>
    %c0_16 = arith.constant 0 : index
    %c0_17 = arith.constant 0 : index
    %c0_18 = arith.constant 0 : index
    %45 = vector.load %arg5[%c0_16, %c0_17, %c0_18] : memref<1x8x128xf32, #tpu.memory_space<vmem>>, vector<1x8x128xf32>
    tpu.vector_store %arg5[%c0_16, %c0_17, %c0_18], %44 {strides = array<i32>} : memref<1x8x128xf32, #tpu.memory_space<vmem>>, vector<1x8x128xf32>,
    return
  }
  func.func @transform_0(%arg0: i32, %arg1: i32) -> (i32, i32) {
    %c1_i32 = arith.constant 1 : i32
    %0 = arith.muli %arg0, %c1_i32 : i32
    %1 = arith.addi %0, %arg1 : i32
    %c0_i32 = arith.constant 0 : i32
    %2 = arith.minsi %1, %c0_i32 : i32
    %c0_i32_0 = arith.constant 0 : i32
    %c0_i32_1 = arith.constant 0 : i32
    return %2, %c0_i32_0 : i32, i32
  }
  func.func @transform_1(%arg0: i32, %arg1: i32) -> (i32, i32) {
    %c1_i32 = arith.constant 1 : i32
    %0 = arith.muli %arg0, %c1_i32 : i32
    %1 = arith.addi %0, %arg1 : i32
    %c0_i32 = arith.constant 0 : i32
    %2 = arith.minsi %1, %c0_i32 : i32
    %c0_i32_0 = arith.constant 0 : i32
    %c0_i32_1 = arith.constant 0 : i32
    return %2, %c0_i32_0 : i32, i32
  }
  func.func @transform_2(%arg0: i32, %arg1: i32) -> (i32, i32) {
    %c0_i32 = arith.constant 0 : i32
    %c0_i32_0 = arith.constant 0 : i32
    %c0_i32_1 = arith.constant 0 : i32
    return %c0_i32, %c0_i32_0 : i32, i32
  }
  func.func @transform_3(%arg0: i32, %arg1: i32) -> (i32, i32, i32) {
    %c0_i32 = arith.constant 0 : i32
    %c0_i32_0 = arith.constant 0 : i32
    %c0_i32_1 = arith.constant 0 : i32
    return %arg0, %c0_i32, %c0_i32_0 : i32, i32, i32
  }
}

</mosaic_0001>

<llo_original>
// kernel: tpu_custom_call.1
$region0: #{tpu_custom_call.1}
  #allocation0 [shape = 'u32[]', space=smem, size = 0x4, offset = 0x4, fixed_abs, tag = 'smem constant byte address 0x4 - core index']
  #allocation1 [shape = 'u32[72,128]{1,0:T(1,128)}', space=vmem, size = 0x9000, scoped, tag = 'internal scratch']
  %s0 = inlined_call_operand.vmem [shape: f32[8,32], index: 0, kind: input, shape index: {}]
  %s1 = inlined_call_operand.vmem [shape: s32[8,1], index: 1, kind: input, shape index: {}]
  %s2 = inlined_call_operand.hbm [shape: f32[32,32], index: 2, kind: input, shape index: {}]
  %s3 = inlined_call_operand.hbm [shape: f32[1,8,128], index: 3, kind: output, shape index: {}]
  %s4 = sld [smem:[#allocation0]]
  $region30: #{tpu_custom_call.1} parent=0
    _
  %s6 = ssub.s32 1, %s4
  %s7 = scalar_select 0, %s6, %s4
  $region1: #{tpu_custom_call.1} parent=0
    #allocation2 [shape = 'u8[16384]{0}', space=vmem, size = 0x4000, scoped, tag = 'input window, operand 2, single buffered']
    #allocation3 [shape = 's32[1]{0}', space=sflag, size = 0x4, scoped, tag = 'scoped memory for tpu_custom_call.1']
    #allocation4 [shape = 's32[1]{0}', space=sflag, size = 0x4, scoped, tag = 'scoped memory for tpu_custom_call.1']
    #allocation5 [shape = 'u8[4096]{0}', space=vmem, size = 0x1000, scoped, tag = 'output window, operand 0, single buffered']
    %8 = vsyncpa [#allocation3], 0
    %9 = vsyncpa [#allocation4], 0
    // Predicated region
    $region2: #{tpu_custom_call.1} parent=1 // pred_check
      _
    $region3: #{tpu_custom_call.1} parent=1 // pred_check_branch
      %11 = sbr.rel (0) target = $region5
    $region4: #{tpu_custom_call.1} parent=1 // pred_region
      %s12 = sadd.s32 0, 0
      %p13 = scmp.lt.s32.totalorder %s12, 0
      %s14 = scalar_select %p13, %s12, 0
      %p15 = scmp.lt.s32.totalorder %s14, 0
      %s16 = scalar_select %p15, %s14, 0
      %s17 = smul.addr %s16, 8
      %s18 = scalar_lea.vmem %s0, %s17
      %s19 = sadd.s32 0, 0
      %p20 = scmp.lt.s32.totalorder %s19, 0
      %s21 = scalar_select %p20, %s19, 0
    $region5: #{tpu_custom_call.1} parent=1 // pred_fallthru
      _
    // Predicated region
    $region6: #{tpu_custom_call.1} parent=1 // pred_check
      _
    $region7: #{tpu_custom_call.1} parent=1 // pred_check_branch
      %23 = sbr.rel (0) target = $region9
    $region8: #{tpu_custom_call.1} parent=1 // pred_region
      %s24 = sadd.s32 0, 0
      %p25 = scmp.lt.s32.totalorder %s24, 0
      %s26 = scalar_select %p25, %s24, 0
      %p27 = scmp.lt.s32.totalorder %s26, 0
      %s28 = scalar_select %p27, %s26, 0
      %s29 = smul.addr %s28, 8
      %s30 = scalar_lea.vmem %s1, %s29
      %s31 = sadd.s32 0, 0
      %p32 = scmp.lt.s32.totalorder %s31, 0
      %s33 = scalar_select %p32, %s31, 0
    $region9: #{tpu_custom_call.1} parent=1 // pred_fallthru
      _
    // Predicated region
    $region10: #{tpu_custom_call.1} parent=1 // pred_check
      _
    $region11: #{tpu_custom_call.1} parent=1 // pred_check_branch
      %35 = sbr.rel (0) target = $region13
    $region12: #{tpu_custom_call.1} parent=1 // pred_region
      %37 = vsyncadd [#allocation3], 0
      %s38 = sshll.u32 %s2, 4
      %s39 = int_to_ptr.hbm [resolvable:$true] %s38
      %s40 = sshll.u32 [#allocation2], 4
      %s41 = int_to_ptr.vmem [resolvable:$true] %s40
      %46 = dma.hbm_to_vmem [thread:$0]  %s39, 512, %s41, [#allocation3], 128, 128, 8
    $region13: #{tpu_custom_call.1} parent=1 // pred_fallthru
      _
    // Predicated region
    $region14: #{tpu_custom_call.1} parent=1 // pred_check
      _
    $region15: #{tpu_custom_call.1} parent=1 // pred_check_branch
      %48 = sbr.rel (0) target = $region17
    $region16: #{tpu_custom_call.1} parent=1 // pred_region
      %50 = dma.done [#allocation3], 512
    $region17: #{tpu_custom_call.1} parent=1 // pred_fallthru
      _
    %s51 = sadd.s32 0, 0
    %p52 = scmp.lt.s32.totalorder %s51, 0
    %s53 = scalar_select %p52, %s51, 0
    %p54 = scmp.lt.s32.totalorder %s53, 0
    %s55 = scalar_select %p54, %s53, 0
    %s56 = smul.addr %s55, 8
    %s57 = scalar_lea.vmem %s0, %s56
    %s58 = sadd.s32 0, 0
    %p59 = scmp.lt.s32.totalorder %s58, 0
    %s60 = scalar_select %p59, %s58, 0
    %p61 = scmp.lt.s32.totalorder %s60, 0
    %s62 = scalar_select %p61, %s60, 0
    %s63 = smul.addr %s62, 8
    %s64 = scalar_lea.vmem %s1, %s63
    %s65 = sadd.s32 0, 0
    %p66 = scmp.lt.s32.totalorder %s65, 0
    %s67 = scalar_select %p66, %s65, 0
    %p68 = scmp.lt.s32.totalorder %s67, 0
    %s69 = scalar_select %p68, %s67, 0
    %s70 = smul.addr %s69, 8
    %s71 = scalar_lea.vmem %s0, %s70
    %s72 = sadd.s32 0, 0
    %p73 = scmp.lt.s32.totalorder %s72, 0
    %s74 = scalar_select %p73, %s72, 0
    %s75 = sadd.s32 0, 0
    %p76 = scmp.lt.s32.totalorder %s75, 0
    %s77 = scalar_select %p76, %s75, 0
    %p78 = scmp.lt.s32.totalorder %s77, 0
    %s79 = scalar_select %p78, %s77, 0
    %s80 = smul.addr %s79, 8
    %s81 = scalar_lea.vmem %s1, %s80
    %s82 = sadd.s32 0, 0
    %p83 = scmp.lt.s32.totalorder %s82, 0
    %s84 = scalar_select %p83, %s82, 0
    %p85 = scmp.eq.s32.totalorder 0, 0
    // Predicated region
    $region18: #{tpu_custom_call.1} parent=1 // pred_check
      %p86 = pneg %p85
    $region19: #{tpu_custom_call.1} parent=1 // pred_check_branch
      %88 = sbr.rel (%p86) target = $region21
    $region20: #{tpu_custom_call.1} parent=1 // pred_region
      %89 = vst [vmem:[#allocation5] sm:$0xff] 0.0
    $region21: #{tpu_custom_call.1} parent=1 // pred_fallthru
      _
    %v90 = vld [vmem:[%s71] sm:$0xff]
    %v91 = vld [vmem:[%s81] sm:$0xff]
    %v92 = vlaneseq
    %v93 = vand.u32 %v92, 127
    %94 = vset.pattern.permute.xlu0 0
    %95 = vperm.xlu0 %94, %v91
    %v96 = vpop.permute.xlu0 %95
    %vm97 = vcmp.eq.s32.totalorder %v93, %v96
    %v98 = vsel %vm97, 1, 0
    %v99 = vcvt.s32.f32 %v98
    %v100 = vld [vmem:[#allocation2] sm:$0xff]
    %v101 = vld [vmem:[#allocation2 + $0x8] sm:$0xff]
    %v102 = vld [vmem:[#allocation2 + $0x10] sm:$0xff]
    %v103 = vld [vmem:[#allocation2 + $0x18] sm:$0xff]
    %vm104 = vcmask 261120
    %v106 = vsel %vm104, %v99, 0
    %108 = vmatpush.msra.mxu0 0.0
    %109 = vmatpush.msra.mxu0 0.0
    %110 = vmatpush.msra.mxu0 0.0
    %111 = vmatpush.msra.mxu0 0.0
    %112 = vmatpush.msra.mxu0 0.0
    %113 = vmatpush.msra.mxu0 0.0
    %114 = vmatpush.msra.mxu0 0.0
    %115 = vmatpush.msra.mxu0 0.0
    %116 = vmatpush.msra.mxu0 0.0
    %117 = vmatpush.msra.mxu0 0.0
    %118 = vmatpush.msra.mxu0 0.0
    %119 = vmatpush.msra.mxu0 0.0
    %v120 = vand.u32 %v103, 4294901760
    %121 = vmatpush.msra.mxu0 %v120
    %v122 = vand.u32 %v102, 4294901760
    %123 = vmatpush.msra.mxu0 %v122
    %v124 = vand.u32 %v101, 4294901760
    %125 = vmatpush.msra.mxu0 %v124
    %v126 = vand.u32 %v100, 4294901760
    %127 = vmatpush.msra.mxu0 %v126
    %v128 = vand.u32 %v106, 4294901760
    %v129 = vsub.f32 %v106, %v128
    %v130 = vand.u32 %v129, 4294901760
    %v131 = vsub.f32 %v129, %v130
    %v132 = vand.u32 %v131, 4294901760
    %133 = vmatmul.f32.gmra.mxu0 %v132
    %v134 = vpop.f32.mrf.mxu0
    %v135 = vadd.f32 0.0, %v134
    %136 = vdwg.mxu0
    %137 = vmatpush.msra.mxu0 0.0
    %138 = vmatpush.msra.mxu0 0.0
    %139 = vmatpush.msra.mxu0 0.0
    %140 = vmatpush.msra.mxu0 0.0
    %141 = vmatpush.msra.mxu0 0.0
    %142 = vmatpush.msra.mxu0 0.0
    %143 = vmatpush.msra.mxu0 0.0
    %144 = vmatpush.msra.mxu0 0.0
    %145 = vmatpush.msra.mxu0 0.0
    %146 = vmatpush.msra.mxu0 0.0
    %147 = vmatpush.msra.mxu0 0.0
    %148 = vmatpush.msra.mxu0 0.0
    %v149 = vand.u32 %v103, 4294901760
    %v150 = vsub.f32 %v103, %v149
    %v151 = vand.u32 %v150, 4294901760
    %v152 = vsub.f32 %v150, %v151
    %v153 = vand.u32 %v152, 4294901760
    %154 = vmatpush.msra.mxu0 %v153
    %v155 = vand.u32 %v102, 4294901760
    %v156 = vsub.f32 %v102, %v155
    %v157 = vand.u32 %v156, 4294901760
    %v158 = vsub.f32 %v156, %v157
    %v159 = vand.u32 %v158, 4294901760
    %160 = vmatpush.msra.mxu0 %v159
    %v161 = vand.u32 %v101, 4294901760
    %v162 = vsub.f32 %v101, %v161
    %v163 = vand.u32 %v162, 4294901760
    %v164 = vsub.f32 %v162, %v163
    %v165 = vand.u32 %v164, 4294901760
    %166 = vmatpush.msra.mxu0 %v165
    %v167 = vand.u32 %v100, 4294901760
    %v168 = vsub.f32 %v100, %v167
    %v169 = vand.u32 %v168, 4294901760
    %v170 = vsub.f32 %v168, %v169
    %v171 = vand.u32 %v170, 4294901760
    %172 = vmatpush.msra.mxu0 %v171
    %v173 = vand.u32 %v106, 4294901760
    %174 = vmatmul.f32.gmra.mxu0 %v173
    %v175 = vpop.f32.mrf.mxu0
    %v176 = vadd.f32 %v135, %v175
    %177 = vdwg.mxu0
    %178 = vmatpush.msra.mxu0 0.0
    %179 = vmatpush.msra.mxu0 0.0
    %180 = vmatpush.msra.mxu0 0.0
    %181 = vmatpush.msra.mxu0 0.0
    %182 = vmatpush.msra.mxu0 0.0
    %183 = vmatpush.msra.mxu0 0.0
    %184 = vmatpush.msra.mxu0 0.0
    %185 = vmatpush.msra.mxu0 0.0
    %186 = vmatpush.msra.mxu0 0.0
    %187 = vmatpush.msra.mxu0 0.0
    %188 = vmatpush.msra.mxu0 0.0
    %189 = vmatpush.msra.mxu0 0.0
    %v190 = vand.u32 %v103, 4294901760
    %v191 = vsub.f32 %v103, %v190
    %192 = vmatpush.msra.mxu0 %v191
    %v193 = vand.u32 %v102, 4294901760
    %v194 = vsub.f32 %v102, %v193
    %195 = vmatpush.msra.mxu0 %v194
    %v196 = vand.u32 %v101, 4294901760
    %v197 = vsub.f32 %v101, %v196
    %198 = vmatpush.msra.mxu0 %v197
    %v199 = vand.u32 %v100, 4294901760
    %v200 = vsub.f32 %v100, %v199
    %201 = vmatpush.msra.mxu0 %v200
    %v202 = vand.u32 %v106, 4294901760
    %v203 = vsub.f32 %v106, %v202
    %204 = vmatmul.f32.gmra.mxu0 %v203
    %v205 = vpop.f32.mrf.mxu0
    %v206 = vadd.f32 %v176, %v205
    %207 = vdwg.mxu0
    %208 = vmatpush.msra.mxu0 0.0
    %209 = vmatpush.msra.mxu0 0.0
    %210 = vmatpush.msra.mxu0 0.0
    %211 = vmatpush.msra.mxu0 0.0
    %212 = vmatpush.msra.mxu0 0.0
    %213 = vmatpush.msra.mxu0 0.0
    %214 = vmatpush.msra.mxu0 0.0
    %215 = vmatpush.msra.mxu0 0.0
    %216 = vmatpush.msra.mxu0 0.0
    %217 = vmatpush.msra.mxu0 0.0
    %218 = vmatpush.msra.mxu0 0.0
    %219 = vmatpush.msra.mxu0 0.0
    %v220 = vand.u32 %v103, 4294901760
    %221 = vmatpush.msra.mxu0 %v220
    %v222 = vand.u32 %v102, 4294901760
    %223 = vmatpush.msra.mxu0 %v222
    %v224 = vand.u32 %v101, 4294901760
    %225 = vmatpush.msra.mxu0 %v224
    %v226 = vand.u32 %v100, 4294901760
    %227 = vmatpush.msra.mxu0 %v226
    %v228 = vand.u32 %v106, 4294901760
    %v229 = vsub.f32 %v106, %v228
    %v230 = vand.u32 %v229, 4294901760
    %231 = vmatmul.f32.gmra.mxu0 %v230
    %v232 = vpop.f32.mrf.mxu0
    %v233 = vadd.f32 %v206, %v232
    %234 = vdwg.mxu0
    %235 = vmatpush.msra.mxu0 0.0
    %236 = vmatpush.msra.mxu0 0.0
    %237 = vmatpush.msra.mxu0 0.0
    %238 = vmatpush.msra.mxu0 0.0
    %239 = vmatpush.msra.mxu0 0.0
    %240 = vmatpush.msra.mxu0 0.0
    %241 = vmatpush.msra.mxu0 0.0
    %242 = vmatpush.msra.mxu0 0.0
    %243 = vmatpush.msra.mxu0 0.0
    %244 = vmatpush.msra.mxu0 0.0
    %245 = vmatpush.msra.mxu0 0.0
    %246 = vmatpush.msra.mxu0 0.0
    %v247 = vand.u32 %v103, 4294901760
    %v248 = vsub.f32 %v103, %v247
    %v249 = vand.u32 %v248, 4294901760
    %250 = vmatpush.msra.mxu0 %v249
    %v251 = vand.u32 %v102, 4294901760
    %v252 = vsub.f32 %v102, %v251
    %v253 = vand.u32 %v252, 4294901760
    %254 = vmatpush.msra.mxu0 %v253
    %v255 = vand.u32 %v101, 4294901760
    %v256 = vsub.f32 %v101, %v255
    %v257 = vand.u32 %v256, 4294901760
    %258 = vmatpush.msra.mxu0 %v257
    %v259 = vand.u32 %v100, 4294901760
    %v260 = vsub.f32 %v100, %v259
    %v261 = vand.u32 %v260, 4294901760
    %262 = vmatpush.msra.mxu0 %v261
    %v263 = vand.u32 %v106, 4294901760
    %264 = vmatmul.f32.gmra.mxu0 %v263
    %v265 = vpop.f32.mrf.mxu0
    %v266 = vadd.f32 %v233, %v265
    %267 = vdwg.mxu0
    %268 = vmatpush.msra.mxu0 0.0
    %269 = vmatpush.msra.mxu0 0.0
    %270 = vmatpush.msra.mxu0 0.0
    %271 = vmatpush.msra.mxu0 0.0
    %272 = vmatpush.msra.mxu0 0.0
    %273 = vmatpush.msra.mxu0 0.0
    %274 = vmatpush.msra.mxu0 0.0
    %275 = vmatpush.msra.mxu0 0.0
    %276 = vmatpush.msra.mxu0 0.0
    %277 = vmatpush.msra.mxu0 0.0
    %278 = vmatpush.msra.mxu0 0.0
    %279 = vmatpush.msra.mxu0 0.0
    %v280 = vand.u32 %v103, 4294901760
    %281 = vmatpush.msra.mxu0 %v280
    %v282 = vand.u32 %v102, 4294901760
    %283 = vmatpush.msra.mxu0 %v282
    %v284 = vand.u32 %v101, 4294901760
    %285 = vmatpush.msra.mxu0 %v284
    %v286 = vand.u32 %v100, 4294901760
    %287 = vmatpush.msra.mxu0 %v286
    %v288 = vand.u32 %v106, 4294901760
    %289 = vmatmul.f32.gmra.mxu0 %v288
    %v290 = vpop.f32.mrf.mxu0
    %v291 = vadd.f32 %v266, %v290
    %292 = vdwg.mxu0
    %v293 = vsel %vm104, %v90, -inf
    %294 = vmax.xlane.f32.xlu0 %v293
    %v295 = vpop.xlane.xlu0 %294
    %v296 = vsub.f32 %v90, %v295
    %v297 = vmul.f32 %v296, 1.442695
    %v298 = vpow.pop %v297
    %v299 = vsel %vm104, %v298, 0.0
    %300 = vadd.xlane.f32.xlu0 %v299
    %v301 = vpop.xlane.xlu0 %300
    %v302 = vlog2.pop %v301
    %v303 = vmul.f32 %v302, 0.6931472
    %v304 = vadd.f32 %v303, %v295
    %v305 = vsel %vm104, %v291, 0.0
    %306 = vadd.xlane.f32.xlu0 %v305
    %v307 = vpop.xlane.xlu0 %306
    %v308 = vmul.f32 %v291, %v90
    %v309 = vsel %vm104, %v308, 0.0
    %310 = vadd.xlane.f32.xlu0 %v309
    %v311 = vpop.xlane.xlu0 %310
    %v312 = vmul.f32 %v307, %v304
    %v313 = vsub.f32 %v312, %v311
    %s314 = sadd.s32 0, 0
    %s315 = smul.u32 %s314, 8
    %v316 = vlaneseq
    %v317 = vshrl.u32 %v316, 7
    %v318 = vstv %s315
    %v319 = vadd.s32 %v318, %v317
    %vm320 = vcmp.lt.s32.totalorder %v319, 8
    %v321 = vsel %vm320, %v313, 0.0
    %v322 = vld [vmem:[#allocation5] sm:$0xff]
    %vm323 = vcmask 7168
    %v324 = vsel %vm323, %v321, 0.0
    %325 = vadd.xlane.f32.xlu0 %v324
    %v326 = vpop.xlane.xlu0 %325
    %v327 = vrot.slane %v326, 4
    %v328 = vadd.f32 %v326, %v327
    %v329 = vrot.slane %v328, 2
    %v330 = vadd.f32 %v328, %v329
    %v331 = vrot.slane %v330, 1
    %v332 = vadd.f32 %v330, %v331
    %s333 = vtos %v332
    %v334 = vstv %s333
    %v335 = vadd.f32 %v322, %v334
    %336 = vst [vmem:[#allocation5] sm:$0xff] %v335
    // Predicated region
    $region22: #{tpu_custom_call.1} parent=1 // pred_check
      _
    $region23: #{tpu_custom_call.1} parent=1 // pred_check_branch
      %338 = sbr.rel (0) target = $region25
    $region24: #{tpu_custom_call.1} parent=1 // pred_region
      %340 = vsyncadd [#allocation4], 0
      %s342 = sshll.u32 [#allocation5], 4
      %s343 = int_to_ptr.vmem [resolvable:$true] %s342
      %s344 = sshll.u32 %s3, 4
      %s345 = int_to_ptr.hbm [resolvable:$true] %s344
      %347 = dma.vmem_to_hbm [thread:$0]  %s343, 128, %s345, [#allocation4]
    $region25: #{tpu_custom_call.1} parent=1 // pred_fallthru
      _
    // Predicated region
    $region26: #{tpu_custom_call.1} parent=1 // pred_check
      _
    $region27: #{tpu_custom_call.1} parent=1 // pred_check_branch
      %349 = sbr.rel (0) target = $region29
    $region28: #{tpu_custom_call.1} parent=1 // pred_region
      %351 = dma.done [#allocation4], 128
    $region29: #{tpu_custom_call.1} parent=1 // pred_fallthru
      _
    %352 = vsyncpa [#allocation3], 1
    %353 = vsyncpa [#allocation4], 1

</llo_original>
